<compile_context>
chip_gen: v7x
topology: tpu7x:2x2x1
jax: 0.10.0
libtpu: 0.0.40
codegen_flags: <defaults>
</compile_context>

<pallas_src>
import functools
import math

import jax
import jax.numpy as jnp
from jax.experimental import pallas as pl
from jax.experimental.pallas import tpu as pltpu


# ----------------------------------------------------------------------------
# Pass 1: fused Q/K/V projection (each token projected exactly once).
# ----------------------------------------------------------------------------
def _qkv_proj_kernel(x_ref, wq_ref, bq_ref, wk_ref, bk_ref, wv_ref, bv_ref,
                     q_ref, k_ref, v_ref, *, scale):
    x = x_ref[0]                                                     # (ts, H)
    q = jnp.dot(x, wq_ref[...], preferred_element_type=jnp.float32) + bq_ref[...]
    q_ref[0] = (q * scale).astype(q_ref.dtype)        # fold 1/sqrt(H) into Q
    k = jnp.dot(x, wk_ref[...], preferred_element_type=jnp.float32) + bk_ref[...]
    k_ref[0] = k.astype(k_ref.dtype)
    v = jnp.dot(x, wv_ref[...], preferred_element_type=jnp.float32) + bv_ref[...]
    v_ref[0] = v.astype(v_ref.dtype)


# ----------------------------------------------------------------------------
# Pass 2: flash attention (online softmax) + dense + residual + LayerNorm.
# ----------------------------------------------------------------------------
def _flash_attn_kernel(q_ref, k_ref, v_ref, x_ref,
                       wd_ref, bd_ref, gamma_ref, beta_ref,
                       o_ref,
                       m_scr, l_scr, acc_scr,
                       *, seq_len, kv_tile, masked):
    ki = pl.program_id(2)
    nk = pl.num_programs(2)

    @pl.when(ki == 0)
    def _init():
        m_scr[...] = jnp.full(m_scr.shape, -jnp.inf, m_scr.dtype)
        l_scr[...] = jnp.zeros(l_scr.shape, l_scr.dtype)
        acc_scr[...] = jnp.zeros(acc_scr.shape, acc_scr.dtype)

    q = q_ref[0]                                                     # (tq, H)
    k = k_ref[0]                                                     # (tkv, H)
    # scores: q @ k^T via a (1,1) contraction (no transposed copy), f32 acc.
    s = jax.lax.dot_general(q, k, (((1,), (1,)), ((), ())),
                            preferred_element_type=jnp.float32)      # (tq, tkv)

    if masked:  # static branch: only emitted when the sequence was padded
        col = ki * kv_tile + jax.lax.broadcasted_iota(jnp.int32, s.shape, 1)
        s = jnp.where(col < seq_len, s, -jnp.inf)

    # ---- online softmax (normalization deferred to the finalize step) -------
    m_prev = m_scr[...]
    m_new = jnp.maximum(m_prev, jnp.max(s, axis=-1, keepdims=True))
    alpha = jnp.exp(m_prev - m_new)
    p = jnp.exp(s - m_new)
    l_scr[...] = alpha * l_scr[...] + jnp.sum(p, axis=-1, keepdims=True)
    acc_scr[...] = alpha * acc_scr[...] + jnp.dot(
        p.astype(v_ref.dtype), v_ref[0], preferred_element_type=jnp.float32)
    m_scr[...] = m_new

    # ---- finalize (last KV step): normalize, dense, residual + LayerNorm ----
    @pl.when(ki == nk - 1)
    def _finalize():
        inv_l = pl.reciprocal(l_scr[...], approx=True)               # EUP slot
        ctx = acc_scr[...] * inv_l                                   # (tq,H) f32
        # attention-prob dropout and output dropout are identity in eval mode
        t1 = jnp.dot(ctx.astype(wd_ref.dtype), wd_ref[...],
                     preferred_element_type=jnp.float32) + bd_ref[...]
        y = t1 + x_ref[0].astype(jnp.float32)
        mu = jnp.mean(y, axis=-1, keepdims=True)
        yc = y - mu
        var = jnp.mean(yc * yc, axis=-1, keepdims=True)
        inv = jax.lax.rsqrt(var + 1e-5)
        o_ref[0] = (yc * inv * gamma_ref[...] + beta_ref[...]).astype(o_ref.dtype)


# ----------------------------------------------------------------------------
# Wrapper
# ----------------------------------------------------------------------------
def _round_up(x, m):
    return (x + m - 1) // m * m


def _lcm(a, b):
    return a * b // math.gcd(a, b)


def _default_tiles(s):
    """MXU-friendly (tq, tkv); larger kv tile amortizes per-step rescales."""
    if s <= 512:
        t = max(16, _round_up(s, 16))
        return t, t
    if s % 512 == 0:
        return 256, 512
    return 256, 256


def _vmem_limit_bytes():
    """Generation-aware scoped-VMEM budget (conservative fallback = v7x 64 MiB)."""
    try:
        cap = int(pltpu.get_tpu_info().vmem_capacity_bytes)
    except Exception:
        cap = 64 * 1024 * 1024
    return int(min(cap * 3 // 4, 96 * 1024 * 1024))


def scaled_dot_self_attention(x, params, *, compute_dtype=jnp.bfloat16,
                              tq=None, tkv=None):
    """x: [B, S, H]; params: dict from init_params. Returns [B, S, H]."""
    B, S, H = x.shape
    out_dtype = x.dtype

    dtq, dtkv = _default_tiles(S)
    tq = dtq if tq is None else tq
    tkv = dtkv if tkv is None else tkv
    assert tq % 8 == 0 and tkv % 8 == 0, "tiles must be sublane-aligned"
    s_pad = _round_up(S, _lcm(tq, tkv))

    x_p = x if s_pad == S else jnp.pad(x, ((0, 0), (0, s_pad - S), (0, 0)))

    # MXU operands in compute_dtype (bf16 default); biases / LN params in f32.
    xc = x_p.astype(compute_dtype)
    wq = params["wq"].astype(compute_dtype)
    wk = params["wk"].astype(compute_dtype)
    wv = params["wv"].astype(compute_dtype)
    wd = params["wd"].astype(compute_dtype)
    bq = params["bq"].astype(jnp.float32)
    bk = params["bk"].astype(jnp.float32)
    bv = params["bv"].astype(jnp.float32)
    bd = params["bd"].astype(jnp.float32)
    gamma = params["gamma"].astype(jnp.float32)
    beta = params["beta"].astype(jnp.float32)

    vmem_limit = _vmem_limit_bytes()
    cbytes = jnp.dtype(compute_dtype).itemsize
    xbytes = jnp.dtype(x.dtype).itemsize

    # ---------------- pass 1: Q/K/V projection (once per token) --------------
    qkv_shape = jax.ShapeDtypeStruct((B, s_pad, H), compute_dtype)
    tile_spec1 = pl.BlockSpec((1, tq, H), lambda b, i: (b, i, 0))
    w_spec1 = pl.BlockSpec((H, H), lambda b, i: (0, 0))
    row_spec1 = pl.BlockSpec((1, H), lambda b, i: (0, 0))

    q, k, v = pl.pallas_call(
        functools.partial(_qkv_proj_kernel, scale=1.0 / math.sqrt(H)),
        out_shape=(qkv_shape, qkv_shape, qkv_shape),
        grid_spec=pltpu.PrefetchScalarGridSpec(
            num_scalar_prefetch=0,
            grid=(B, s_pad // tq),
            in_specs=[tile_spec1,
                      w_spec1, row_spec1,     # query
                      w_spec1, row_spec1,     # key
                      w_spec1, row_spec1],    # value
            out_specs=(tile_spec1, tile_spec1, tile_spec1)),
        compiler_params=pltpu.CompilerParams(
            dimension_semantics=("parallel", "parallel"),
            vmem_limit_bytes=vmem_limit),
        cost_estimate=pl.CostEstimate(
            flops=6 * B * s_pad * H * H,
            transcendentals=0,
            bytes_accessed=(4 * B * s_pad * H + 3 * H * H) * cbytes + 3 * H * 4),
    )(xc, wq, bq, wk, bk, wv, bv)

    # ---------------- pass 2: flash attention + dense + residual + LN --------
    q_spec = pl.BlockSpec((1, tq, H), lambda b, qi, ki: (b, qi, 0))
    kv_spec = pl.BlockSpec((1, tkv, H), lambda b, qi, ki: (b, ki, 0))  # FIXED
    x_spec = pl.BlockSpec((1, tq, H), lambda b, qi, ki: (b, qi, 0))
    w_spec = pl.BlockSpec((H, H), lambda b, qi, ki: (0, 0))
    row_spec = pl.BlockSpec((1, H), lambda b, qi, ki: (0, 0))
    out_spec = pl.BlockSpec((1, tq, H), lambda b, qi, ki: (b, qi, 0))

    n_q_tiles = s_pad // tq
    flops2 = (4 * B * s_pad * s_pad * H           # QK^T + PV
              + 2 * B * s_pad * H * H             # dense
              + 10 * B * s_pad * H)               # softmax rescale + LayerNorm
    trans2 = B * s_pad * s_pad + 2 * B * s_pad
    bytes2 = ((1 + 2 * n_q_tiles) * B * s_pad * H * cbytes   # q once, k/v per q tile
              + 2 * B * s_pad * H * xbytes                    # x in, out
              + H * H * cbytes + 3 * H * 4)

    out_p = pl.pallas_call(
        functools.partial(_flash_attn_kernel, seq_len=S, kv_tile=tkv,
                          masked=(s_pad != S)),
        out_shape=jax.ShapeDtypeStruct((B, s_pad, H), out_dtype),
        grid_spec=pltpu.PrefetchScalarGridSpec(
            num_scalar_prefetch=0,
            grid=(B, s_pad // tq, s_pad // tkv),
            in_specs=[q_spec, kv_spec, kv_spec, x_spec,
                      w_spec, row_spec, row_spec, row_spec],
            out_specs=out_spec,
            scratch_shapes=[
                pltpu.VMEM((tq, 1), jnp.float32),   # running max
                pltpu.VMEM((tq, 1), jnp.float32),   # running denom
                pltpu.VMEM((tq, H), jnp.float32),   # unnormalized context
            ]),
        compiler_params=pltpu.CompilerParams(
            dimension_semantics=("parallel", "parallel", "arbitrary"),
            vmem_limit_bytes=vmem_limit),
        cost_estimate=pl.CostEstimate(
            flops=flops2, transcendentals=trans2, bytes_accessed=bytes2),
    )(q, k, v, x_p, wd, bd, gamma, beta)

    return out_p if s_pad == S else out_p[:, :S, :]


# ----------------------------------------------------------------------------
# Params / reference
# ----------------------------------------------------------------------------
def init_params(key, hidden_size):
    """Deterministic parameter init mimicking nn.Linear/nn.LayerNorm shapes."""
    H = hidden_size
    ks = jax.random.split(key, 8)
    bound = 1.0 / math.sqrt(H)

    def lin(kw, kb):
        # Stored (H_in, H_out) so the kernel does x @ W + b (== torch x @ W.T + b).
        w = jax.random.uniform(kw, (H, H), jnp.float32, -bound, bound)
        b = jax.random.uniform(kb, (1, H), jnp.float32, -bound, bound)
        return w, b

    wq, bq = lin(ks[0], ks[1])
    wk, bk = lin(ks[2], ks[3])
    wv, bv = lin(ks[4], ks[5])
    wd, bd = lin(ks[6], ks[7])
    gamma = jnp.ones((1, H), jnp.float32)
    beta = jnp.zeros((1, H), jnp.float32)
    return dict(wq=wq, bq=bq, wk=wk, bk=bk, wv=wv, bv=bv,
                wd=wd, bd=bd, gamma=gamma, beta=beta)


def _reference(x, p):
    """Pure-JAX f32 reference for sanity checking."""
    q = x @ p["wq"] + p["bq"]
    k = x @ p["wk"] + p["bk"]
    v = x @ p["wv"] + p["bv"]
    H = x.shape[-1]
    scores = jnp.einsum("bqd,bkd->bqk", q, k) / math.sqrt(H)
    probs = jax.nn.softmax(scores, axis=-1)
    ctx = jnp.einsum("bqk,bkd->bqd", probs, v)
    t1 = ctx @ p["wd"] + p["bd"]
    y = t1 + x
    mu = jnp.mean(y, axis=-1, keepdims=True)
    var = jnp.mean((y - mu) ** 2, axis=-1, keepdims=True)
    return (y - mu) / jnp.sqrt(var + 1e-5) * p["gamma"] + p["beta"]


if __name__ == "__main__":
    key = jax.random.PRNGKey(0)
    kx, kp, kx2, kp2 = jax.random.split(key, 4)

    # Test 1: small shapes, f32 compute path, tight tolerance.
    # (S=8 also exercises the padding + key-masking path: S is padded to 16.)
    B, S, H = 2, 8, 32
    x = jax.random.normal(kx, (B, S, H), jnp.float32)
    params = init_params(kp, H)
    out = jax.block_until_ready(
        scaled_dot_self_attention(x, params, compute_dtype=jnp.float32))
    ref = _reference(x, params)
    assert out.shape == (B, S, H)
    assert jnp.allclose(out, ref, atol=2e-3, rtol=2e-3), "f32 mismatch vs reference"

    # Test 2: multi-tile flash path (2 q tiles x 2 kv tiles per batch) with the
    # default bf16 MXU-operand compute path (bf16-appropriate tolerance).
    B2, S2, H2 = 2, 128, 128
    x2 = jax.random.normal(kx2, (B2, S2, H2), jnp.float32)
    params2 = init_params(kp2, H2)
    out2 = jax.block_until_ready(
        scaled_dot_self_attention(x2, params2, compute_dtype=jnp.bfloat16,
                                  tq=64, tkv=64))
    ref2 = _reference(x2, params2)
    assert out2.shape == (B2, S2, H2)
    assert jnp.allclose(out2, ref2, atol=3e-2, rtol=3e-2), "bf16 tiled mismatch"

    print("KERNEL_OK")
</pallas_src>

<mosaic_0001>
module attributes {stable_mosaic.version = 11 : i64} {
  func.func @_qkv_proj_kernel(%arg0: i32, %arg1: i32, %arg2: memref<1x16x32xf32, #tpu.memory_space<vmem>>, %arg3: memref<32x32xf32, #tpu.memory_space<vmem>>, %arg4: memref<1x32xf32, #tpu.memory_space<vmem>>, %arg5: memref<32x32xf32, #tpu.memory_space<vmem>>, %arg6: memref<1x32xf32, #tpu.memory_space<vmem>>, %arg7: memref<32x32xf32, #tpu.memory_space<vmem>>, %arg8: memref<1x32xf32, #tpu.memory_space<vmem>>, %arg9: memref<1x16x32xf32, #tpu.memory_space<vmem>>, %arg10: memref<1x16x32xf32, #tpu.memory_space<vmem>>, %arg11: memref<1x16x32xf32, #tpu.memory_space<vmem>>) attributes {dimension_semantics = [#tpu.dimension_semantics<parallel>, #tpu.dimension_semantics<parallel>], iteration_bounds = array<i64: 2, 1>, scalar_prefetch = 0 : i64, scratch_operands = 0 : i64, tpu.core_type = #tpu.core_type<tc>, window_params = [{transform_indices = @transform_0, window_bounds = array<i64: 1, 16, 32>}, {pipeline_mode = #tpu.pipeline_mode<synchronous>, transform_indices = @transform_1, window_bounds = array<i64: 32, 32>}, {pipeline_mode = #tpu.pipeline_mode<synchronous>, transform_indices = @transform_2, window_bounds = array<i64: 1, 32>}, {pipeline_mode = #tpu.pipeline_mode<synchronous>, transform_indices = @transform_3, window_bounds = array<i64: 32, 32>}, {pipeline_mode = #tpu.pipeline_mode<synchronous>, transform_indices = @transform_4, window_bounds = array<i64: 1, 32>}, {pipeline_mode = #tpu.pipeline_mode<synchronous>, transform_indices = @transform_5, window_bounds = array<i64: 32, 32>}, {pipeline_mode = #tpu.pipeline_mode<synchronous>, transform_indices = @transform_6, window_bounds = array<i64: 1, 32>}, {transform_indices = @transform_7, window_bounds = array<i64: 1, 16, 32>}, {transform_indices = @transform_8, window_bounds = array<i64: 1, 16, 32>}, {transform_indices = @transform_9, window_bounds = array<i64: 1, 16, 32>}]} {
    %c0 = arith.constant 0 : index
    %c0_0 = arith.constant 0 : index
    %c0_1 = arith.constant 0 : index
    %0 = vector.load %arg2[%c0, %c0_0, %c0_1] : memref<1x16x32xf32, #tpu.memory_space<vmem>>, vector<1x16x32xf32>
    %1 = vector.shape_cast %0 : vector<1x16x32xf32> to vector<16x32xf32>
    %c0_2 = arith.constant 0 : index
    %c0_3 = arith.constant 0 : index
    %2 = vector.load %arg3[%c0_2, %c0_3] : memref<32x32xf32, #tpu.memory_space<vmem>>, vector<32x32xf32>
    %cst = arith.constant dense<0.000000e+00> : vector<16x32xf32>
    %3 = tpu.matmul %1, %2, %cst {dimension_numbers = #tpu.dot_dimension_numbers<[1], [0], [0], [1], [0, 0, 1, 1], [], []>} : vector<16x32xf32>, vector<32x32xf32>, vector<16x32xf32> -> vector<16x32xf32>
    %c0_4 = arith.constant 0 : index
    %c0_5 = arith.constant 0 : index
    %4 = vector.load %arg4[%c0_4, %c0_5] : memref<1x32xf32, #tpu.memory_space<vmem>>, vector<1x32xf32>
    %5 = vector.broadcast %4 : vector<1x32xf32> to vector<16x32xf32>
    %6 = arith.addf %3, %5 : vector<16x32xf32>
    %cst_6 = arith.constant 0.176776692 : f32
    %7 = vector.broadcast %cst_6 : f32 to vector<16x32xf32>
    %8 = arith.mulf %6, %7 : vector<16x32xf32>
    %c0_7 = arith.constant 0 : index
    %c0_8 = arith.constant 0 : index
    %c0_9 = arith.constant 0 : index
    %9 = vector.load %arg9[%c0_7, %c0_8, %c0_9] : memref<1x16x32xf32, #tpu.memory_space<vmem>>, vector<1x16x32xf32>
    %10 = vector.shape_cast %9 : vector<1x16x32xf32> to vector<16x32xf32>
    %11 = vector.shape_cast %8 : vector<16x32xf32> to vector<1x16x32xf32>
    tpu.vector_store %arg9[%c0_7, %c0_8, %c0_9], %11 {strides = array<i32>} : memref<1x16x32xf32, #tpu.memory_space<vmem>>, vector<1x16x32xf32>,
    %c0_10 = arith.constant 0 : index
    %c0_11 = arith.constant 0 : index
    %12 = vector.load %arg5[%c0_10, %c0_11] : memref<32x32xf32, #tpu.memory_space<vmem>>, vector<32x32xf32>
    %cst_12 = arith.constant dense<0.000000e+00> : vector<16x32xf32>
    %13 = tpu.matmul %1, %12, %cst_12 {dimension_numbers = #tpu.dot_dimension_numbers<[1], [0], [0], [1], [0, 0, 1, 1], [], []>} : vector<16x32xf32>, vector<32x32xf32>, vector<16x32xf32> -> vector<16x32xf32>
    %c0_13 = arith.constant 0 : index
    %c0_14 = arith.constant 0 : index
    %14 = vector.load %arg6[%c0_13, %c0_14] : memref<1x32xf32, #tpu.memory_space<vmem>>, vector<1x32xf32>
    %15 = vector.broadcast %14 : vector<1x32xf32> to vector<16x32xf32>
    %16 = arith.addf %13, %15 : vector<16x32xf32>
    %c0_15 = arith.constant 0 : index
    %c0_16 = arith.constant 0 : index
    %c0_17 = arith.constant 0 : index
    %17 = vector.load %arg10[%c0_15, %c0_16, %c0_17] : memref<1x16x32xf32, #tpu.memory_space<vmem>>, vector<1x16x32xf32>
    %18 = vector.shape_cast %17 : vector<1x16x32xf32> to vector<16x32xf32>
    %19 = vector.shape_cast %16 : vector<16x32xf32> to vector<1x16x32xf32>
    tpu.vector_store %arg10[%c0_15, %c0_16, %c0_17], %19 {strides = array<i32>} : memref<1x16x32xf32, #tpu.memory_space<vmem>>, vector<1x16x32xf32>,
    %c0_18 = arith.constant 0 : index
    %c0_19 = arith.constant 0 : index
    %20 = vector.load %arg7[%c0_18, %c0_19] : memref<32x32xf32, #tpu.memory_space<vmem>>, vector<32x32xf32>
    %cst_20 = arith.constant dense<0.000000e+00> : vector<16x32xf32>
    %21 = tpu.matmul %1, %20, %cst_20 {dimension_numbers = #tpu.dot_dimension_numbers<[1], [0], [0], [1], [0, 0, 1, 1], [], []>} : vector<16x32xf32>, vector<32x32xf32>, vector<16x32xf32> -> vector<16x32xf32>
    %c0_21 = arith.constant 0 : index
    %c0_22 = arith.constant 0 : index
    %22 = vector.load %arg8[%c0_21, %c0_22] : memref<1x32xf32, #tpu.memory_space<vmem>>, vector<1x32xf32>
    %23 = vector.broadcast %22 : vector<1x32xf32> to vector<16x32xf32>
    %24 = arith.addf %21, %23 : vector<16x32xf32>
    %c0_23 = arith.constant 0 : index
    %c0_24 = arith.constant 0 : index
    %c0_25 = arith.constant 0 : index
    %25 = vector.load %arg11[%c0_23, %c0_24, %c0_25] : memref<1x16x32xf32, #tpu.memory_space<vmem>>, vector<1x16x32xf32>
    %26 = vector.shape_cast %25 : vector<1x16x32xf32> to vector<16x32xf32>
    %27 = vector.shape_cast %24 : vector<16x32xf32> to vector<1x16x32xf32>
    tpu.vector_store %arg11[%c0_23, %c0_24, %c0_25], %27 {strides = array<i32>} : memref<1x16x32xf32, #tpu.memory_space<vmem>>, vector<1x16x32xf32>,
    return
  }
  func.func @transform_0(%arg0: i32, %arg1: i32) -> (i32, i32, i32) {
    %c0_i32 = arith.constant 0 : i32
    %c0_i32_0 = arith.constant 0 : i32
    return %arg0, %arg1, %c0_i32 : i32, i32, i32
  }
  func.func @transform_1(%arg0: i32, %arg1: i32) -> (i32, i32) {
    %c0_i32 = arith.constant 0 : i32
    %c0_i32_0 = arith.constant 0 : i32
    %c0_i32_1 = arith.constant 0 : i32
    return %c0_i32, %c0_i32_0 : i32, i32
  }
  func.func @transform_2(%arg0: i32, %arg1: i32) -> (i32, i32) {
    %c0_i32 = arith.constant 0 : i32
    %c0_i32_0 = arith.constant 0 : i32
    %c0_i32_1 = arith.constant 0 : i32
    return %c0_i32, %c0_i32_0 : i32, i32
  }
  func.func @transform_3(%arg0: i32, %arg1: i32) -> (i32, i32) {
    %c0_i32 = arith.constant 0 : i32
    %c0_i32_0 = arith.constant 0 : i32
    %c0_i32_1 = arith.constant 0 : i32
    return %c0_i32, %c0_i32_0 : i32, i32
  }
  func.func @transform_4(%arg0: i32, %arg1: i32) -> (i32, i32) {
    %c0_i32 = arith.constant 0 : i32
    %c0_i32_0 = arith.constant 0 : i32
    %c0_i32_1 = arith.constant 0 : i32
    return %c0_i32, %c0_i32_0 : i32, i32
  }
  func.func @transform_5(%arg0: i32, %arg1: i32) -> (i32, i32) {
    %c0_i32 = arith.constant 0 : i32
    %c0_i32_0 = arith.constant 0 : i32
    %c0_i32_1 = arith.constant 0 : i32
    return %c0_i32, %c0_i32_0 : i32, i32
  }
  func.func @transform_6(%arg0: i32, %arg1: i32) -> (i32, i32) {
    %c0_i32 = arith.constant 0 : i32
    %c0_i32_0 = arith.constant 0 : i32
    %c0_i32_1 = arith.constant 0 : i32
    return %c0_i32, %c0_i32_0 : i32, i32
  }
  func.func @transform_7(%arg0: i32, %arg1: i32) -> (i32, i32, i32) {
    %c0_i32 = arith.constant 0 : i32
    %c0_i32_0 = arith.constant 0 : i32
    return %arg0, %arg1, %c0_i32 : i32, i32, i32
  }
  func.func @transform_8(%arg0: i32, %arg1: i32) -> (i32, i32, i32) {
    %c0_i32 = arith.constant 0 : i32
    %c0_i32_0 = arith.constant 0 : i32
    return %arg0, %arg1, %c0_i32 : i32, i32, i32
  }
  func.func @transform_9(%arg0: i32, %arg1: i32) -> (i32, i32, i32) {
    %c0_i32 = arith.constant 0 : i32
    %c0_i32_0 = arith.constant 0 : i32
    return %arg0, %arg1, %c0_i32 : i32, i32, i32
  }
}

</mosaic_0001>

<llo_original>
// kernel: tpu_custom_call.1
$region0: #{tpu_custom_call.1}
  #allocation0 [shape = 'u32[]', space=smem, size = 0x4, offset = 0x4, fixed_abs, tag = 'smem constant byte address 0x4 - core index']
  #allocation1 [shape = 'u32[144,128]{1,0:T(1,128)}', space=vmem, size = 0x12000, scoped, tag = 'internal scratch']
  %s0 = inlined_call_operand.hbm [shape: f32[2,16,32], index: 0, kind: input, shape index: {}]
  %s1 = inlined_call_operand.hbm [shape: f32[32,32], index: 1, kind: input, shape index: {}]
  %s2 = inlined_call_operand.vmem [shape: f32[1,32], index: 2, kind: input, shape index: {}]
  %s3 = inlined_call_operand.hbm [shape: f32[32,32], index: 3, kind: input, shape index: {}]
  %s4 = inlined_call_operand.vmem [shape: f32[1,32], index: 4, kind: input, shape index: {}]
  %s5 = inlined_call_operand.hbm [shape: f32[32,32], index: 5, kind: input, shape index: {}]
  %s6 = inlined_call_operand.vmem [shape: f32[1,32], index: 6, kind: input, shape index: {}]
  %s7 = inlined_call_operand.hbm [shape: f32[2,16,32], index: 7, kind: output, shape index: {0}]
  %s8 = inlined_call_operand.hbm [shape: f32[2,16,32], index: 8, kind: output, shape index: {1}]
  %s9 = inlined_call_operand.hbm [shape: f32[2,16,32], index: 9, kind: output, shape index: {2}]
  %10 = xla_tuple %s7, %s8, %s9
  %s11 = sld [smem:[#allocation0]]
  $region93: #{tpu_custom_call.1} parent=0
    _
  %s13 = ssub.s32 1, %s11
  %s14 = scalar_select 0, %s13, %s11
  $region1: #{tpu_custom_call.1} parent=0
    #allocation2 [shape = 'u8[16384]{0}', space=vmem, size = 0x4000, scoped, tag = 'input window, operand 0']
    #allocation3 [shape = 's32[2]{0}', space=sflag, size = 0x8, scoped, tag = 'scoped memory for tpu_custom_call.1']
    #allocation4 [shape = 's32[2]{0}', space=sflag, size = 0x8, scoped, tag = 'scoped memory for tpu_custom_call.1']
    #allocation5 [shape = 'u8[16384]{0}', space=vmem, size = 0x4000, scoped, tag = 'input window, operand 1, single buffered']
    #allocation6 [shape = 's32[1]{0}', space=sflag, size = 0x4, scoped, tag = 'scoped memory for tpu_custom_call.1']
    #allocation7 [shape = 'u8[16384]{0}', space=vmem, size = 0x4000, scoped, tag = 'input window, operand 3, single buffered']
    #allocation8 [shape = 'u8[16384]{0}', space=vmem, size = 0x4000, scoped, tag = 'input window, operand 5, single buffered']
    #allocation9 [shape = 's32[1]{0}', space=sflag, size = 0x4, scoped, tag = 'scoped memory for tpu_custom_call.1']
    #allocation10 [shape = 'u8[16384]{0}', space=vmem, size = 0x4000, scoped, tag = 'output window, operand 0']
    #allocation11 [shape = 'u8[16384]{0}', space=vmem, size = 0x4000, scoped, tag = 'output window, operand 1']
    #allocation12 [shape = 's32[2]{0}', space=sflag, size = 0x8, scoped, tag = 'scoped memory for tpu_custom_call.1']
    #allocation13 [shape = 'u8[16384]{0}', space=vmem, size = 0x4000, scoped, tag = 'output window, operand 2']
    %15 = vsyncpa [#allocation3], 0
    %s16 = scalar_lea.sflag [#allocation3], 1
    %17 = vsyncpa %s16, 0
    %18 = vsyncpa [#allocation6], 0
    %19 = vsyncpa [#allocation9], 0
    %20 = vsyncpa [#allocation4], 0
    %s21 = scalar_lea.sflag [#allocation4], 1
    %22 = vsyncpa %s21, 0
    %23 = vsyncpa [#allocation12], 0
    %s24 = scalar_lea.sflag [#allocation12], 1
    %25 = vsyncpa %s24, 0
    loop: start=0, step=1, limit=4
    $region2: #{tpu_custom_call.1} parent=1 // loop_pre_header
      _
    $region3: #{tpu_custom_call.1} parent=1 // loop_header
      %s27 = sphi 0, %s31
      %p28 = scmp.ge.s32.totalorder %s27, 4
      %s34 = sphi 0, %s46
      %s35 = sphi 0, %s42
      %s36 = sphi 0, %s34
      %s37 = sphi 0, %s35
      %s38 = sphi 0, %s36
      %s39 = sphi 0, %s37
      %s51 = sphi 0, %s53
      %s54 = sphi 0, %s51
      %s55 = sphi 0, %s54
      %s71 = sphi 0, %s55
      %s75 = sphi 0, %s75
      %s77 = sphi 0, %s75
      %s78 = sphi 0, %s77
      %s92 = sphi 0, %s78
      %s96 = sphi 0, %s96
      %s98 = sphi 0, %s96
      %s99 = sphi 0, %s98
      %s113 = sphi 0, %s99
      %s117 = sphi 0, %s117
      %s119 = sphi 0, %s117
      %s120 = sphi 0, %s119
      %s134 = sphi 0, %s120
      %s138 = sphi 0, %s138
      %s140 = sphi 0, %s138
      %s141 = sphi 0, %s140
      %s155 = sphi 0, %s141
      %s159 = sphi 0, %s159
      %s161 = sphi 0, %s159
      %s162 = sphi 0, %s161
      %s176 = sphi 0, %s162
      %s180 = sphi 0, %s180
      %s182 = sphi 0, %s180
      %s183 = sphi 0, %s182
      %s197 = sphi 0, %s183
      %s205 = sphi 0, %s207
      %s208 = sphi 0, %s205
      %s209 = sphi 0, %s208
      %s225 = sphi 0, %s209
      %s233 = sphi 0, %s235
      %s236 = sphi 0, %s233
      %s237 = sphi 0, %s236
      %s253 = sphi 0, %s237
      %s261 = sphi 0, %s263
      %s264 = sphi 0, %s261
      %s265 = sphi 0, %s264
      %s281 = sphi 0, %s265
    $region4: #{tpu_custom_call.1} parent=1 // loop_header_branch
      %30 = sbr.rel (%p28) target = $region8
    $region5: #{tpu_custom_call.1} parent=1 // loop_body
      %s32 = ssub.s32 %s27, 1
      %s33 = ssub.s32 %s27, 2
      %s40 = sadd.s32 1, %s35
      %p41 = scmp.ge.s32.totalorder %s40, 1
      %s42 = scalar_select %p41, 0, %s40
      %s43 = sadd.s32 1, %s34
      %s44 = scalar_select %p41, %s43, %s34
      %p45 = scmp.ge.s32.totalorder %s44, 2
      %s46 = scalar_select %p45, 0, %s44
      %s47 = ssub.s32 %s34, %s46
      %s48 = ssub.s32 %s35, %s42
      %s49 = sor.u32 %s47, %s48
      %p50 = scmp.eq.s32.totalorder %s49, 0
      %s52 = sadd.s32 %s51, 1
      %s53 = scalar_select %p50, %s51, %s52
      %p56 = pneg %p50
      %p57 = scmp.eq.s32.totalorder %s27, 1
      %p58 = por %p56, %p57
      %p59 = scmp.ne.s32.totalorder %s51, %s54
      %p60 = scmp.eq.s32.totalorder %s27, 0
      %p61 = por %p59, %p60
      %p62 = scmp.ne.s32.totalorder %s51, %s54
      %p63 = scmp.eq.s32.totalorder %s32, 1
      %p64 = por %p62, %p63
      %p65 = scmp.ne.s32.totalorder %s54, %s55
      %p66 = scmp.eq.s32.totalorder %s32, 0
      %p67 = por %p65, %p66
      %p68 = scmp.ne.s32.totalorder %s54, %s55
      %p69 = scmp.eq.s32.totalorder %s33, 1
      %p70 = por %p68, %p69
      %p72 = scmp.ne.s32.totalorder %s55, %s71
      %p73 = scmp.eq.s32.totalorder %s33, 0
      %p74 = por %p72, %p73
      %s76 = sadd.s32 %s75, 1
      %p79 = scmp.eq.s32.totalorder %s27, 1
      %p80 = scmp.ne.s32.totalorder %s75, %s77
      %p81 = scmp.eq.s32.totalorder %s27, 0
      %p82 = por %p80, %p81
      %p83 = scmp.ne.s32.totalorder %s75, %s77
      %p84 = scmp.eq.s32.totalorder %s32, 1
      %p85 = por %p83, %p84
      %p86 = scmp.ne.s32.totalorder %s77, %s78
      %p87 = scmp.eq.s32.totalorder %s32, 0
      %p88 = por %p86, %p87
      %p89 = scmp.ne.s32.totalorder %s77, %s78
      %p90 = scmp.eq.s32.totalorder %s33, 1
      %p91 = por %p89, %p90
      %p93 = scmp.ne.s32.totalorder %s78, %s92
      %p94 = scmp.eq.s32.totalorder %s33, 0
      %p95 = por %p93, %p94
      %s97 = sadd.s32 %s96, 1
      %p100 = scmp.eq.s32.totalorder %s27, 1
      %p101 = scmp.ne.s32.totalorder %s96, %s98
      %p102 = scmp.eq.s32.totalorder %s27, 0
      %p103 = por %p101, %p102
      %p104 = scmp.ne.s32.totalorder %s96, %s98
      %p105 = scmp.eq.s32.totalorder %s32, 1
      %p106 = por %p104, %p105
      %p107 = scmp.ne.s32.totalorder %s98, %s99
      %p108 = scmp.eq.s32.totalorder %s32, 0
      %p109 = por %p107, %p108
      %p110 = scmp.ne.s32.totalorder %s98, %s99
      %p111 = scmp.eq.s32.totalorder %s33, 1
      %p112 = por %p110, %p111
      %p114 = scmp.ne.s32.totalorder %s99, %s113
      %p115 = scmp.eq.s32.totalorder %s33, 0
      %p116 = por %p114, %p115
      %s118 = sadd.s32 %s117, 1
      %p121 = scmp.eq.s32.totalorder %s27, 1
      %p122 = scmp.ne.s32.totalorder %s117, %s119
      %p123 = scmp.eq.s32.totalorder %s27, 0
      %p124 = por %p122, %p123
      %p125 = scmp.ne.s32.totalorder %s117, %s119
      %p126 = scmp.eq.s32.totalorder %s32, 1
      %p127 = por %p125, %p126
      %p128 = scmp.ne.s32.totalorder %s119, %s120
      %p129 = scmp.eq.s32.totalorder %s32, 0
      %p130 = por %p128, %p129
      %p131 = scmp.ne.s32.totalorder %s119, %s120
      %p132 = scmp.eq.s32.totalorder %s33, 1
      %p133 = por %p131, %p132
      %p135 = scmp.ne.s32.totalorder %s120, %s134
      %p136 = scmp.eq.s32.totalorder %s33, 0
      %p137 = por %p135, %p136
      %s139 = sadd.s32 %s138, 1
      %p142 = scmp.eq.s32.totalorder %s27, 1
      %p143 = scmp.ne.s32.totalorder %s138, %s140
      %p144 = scmp.eq.s32.totalorder %s27, 0
      %p145 = por %p143, %p144
      %p146 = scmp.ne.s32.totalorder %s138, %s140
      %p147 = scmp.eq.s32.totalorder %s32, 1
      %p148 = por %p146, %p147
      %p149 = scmp.ne.s32.totalorder %s140, %s141
      %p150 = scmp.eq.s32.totalorder %s32, 0
      %p151 = por %p149, %p150
      %p152 = scmp.ne.s32.totalorder %s140, %s141
      %p153 = scmp.eq.s32.totalorder %s33, 1
      %p154 = por %p152, %p153
      %p156 = scmp.ne.s32.totalorder %s141, %s155
      %p157 = scmp.eq.s32.totalorder %s33, 0
      %p158 = por %p156, %p157
      %s160 = sadd.s32 %s159, 1
      %p163 = scmp.eq.s32.totalorder %s27, 1
      %p164 = scmp.ne.s32.totalorder %s159, %s161
      %p165 = scmp.eq.s32.totalorder %s27, 0
      %p166 = por %p164, %p165
      %p167 = scmp.ne.s32.totalorder %s159, %s161
      %p168 = scmp.eq.s32.totalorder %s32, 1
      %p169 = por %p167, %p168
      %p170 = scmp.ne.s32.totalorder %s161, %s162
      %p171 = scmp.eq.s32.totalorder %s32, 0
      %p172 = por %p170, %p171
      %p173 = scmp.ne.s32.totalorder %s161, %s162
      %p174 = scmp.eq.s32.totalorder %s33, 1
      %p175 = por %p173, %p174
      %p177 = scmp.ne.s32.totalorder %s162, %s176
      %p178 = scmp.eq.s32.totalorder %s33, 0
      %p179 = por %p177, %p178
      %s181 = sadd.s32 %s180, 1
      %p184 = scmp.eq.s32.totalorder %s27, 1
      %p185 = scmp.ne.s32.totalorder %s180, %s182
      %p186 = scmp.eq.s32.totalorder %s27, 0
      %p187 = por %p185, %p186
      %p188 = scmp.ne.s32.totalorder %s180, %s182
      %p189 = scmp.eq.s32.totalorder %s32, 1
      %p190 = por %p188, %p189
      %p191 = scmp.ne.s32.totalorder %s182, %s183
      %p192 = scmp.eq.s32.totalorder %s32, 0
      %p193 = por %p191, %p192
      %p194 = scmp.ne.s32.totalorder %s182, %s183
      %p195 = scmp.eq.s32.totalorder %s33, 1
      %p196 = por %p194, %p195
      %p198 = scmp.ne.s32.totalorder %s183, %s197
      %p199 = scmp.eq.s32.totalorder %s33, 0
      %p200 = por %p198, %p199
      %s201 = ssub.s32 %s34, %s46
      %s202 = ssub.s32 %s35, %s42
      %s203 = sor.u32 %s201, %s202
      %p204 = scmp.eq.s32.totalorder %s203, 0
      %s206 = sadd.s32 %s205, 1
      %s207 = scalar_select %p204, %s205, %s206
      %p210 = pneg %p204
      %p211 = scmp.eq.s32.totalorder %s27, 1
      %p212 = por %p210, %p211
      %p213 = scmp.ne.s32.totalorder %s205, %s208
      %p214 = scmp.eq.s32.totalorder %s27, 0
      %p215 = por %p213, %p214
      %p216 = scmp.ne.s32.totalorder %s205, %s208
      %p217 = scmp.eq.s32.totalorder %s32, 1
      %p218 = por %p216, %p217
      %p219 = scmp.ne.s32.totalorder %s208, %s209
      %p220 = scmp.eq.s32.totalorder %s32, 0
      %p221 = por %p219, %p220
      %p222 = scmp.ne.s32.totalorder %s208, %s209
      %p223 = scmp.eq.s32.totalorder %s33, 1
      %p224 = por %p222, %p223
      %p226 = scmp.ne.s32.totalorder %s209, %s225
      %p227 = scmp.eq.s32.totalorder %s33, 0
      %p228 = por %p226, %p227
      %s229 = ssub.s32 %s34, %s46
      %s230 = ssub.s32 %s35, %s42
      %s231 = sor.u32 %s229, %s230
      %p232 = scmp.eq.s32.totalorder %s231, 0
      %s234 = sadd.s32 %s233, 1
      %s235 = scalar_select %p232, %s233, %s234
      %p238 = pneg %p232
      %p239 = scmp.eq.s32.totalorder %s27, 1
      %p240 = por %p238, %p239
      %p241 = scmp.ne.s32.totalorder %s233, %s236
      %p242 = scmp.eq.s32.totalorder %s27, 0
      %p243 = por %p241, %p242
      %p244 = scmp.ne.s32.totalorder %s233, %s236
      %p245 = scmp.eq.s32.totalorder %s32, 1
      %p246 = por %p244, %p245
      %p247 = scmp.ne.s32.totalorder %s236, %s237
      %p248 = scmp.eq.s32.totalorder %s32, 0
      %p249 = por %p247, %p248
      %p250 = scmp.ne.s32.totalorder %s236, %s237
      %p251 = scmp.eq.s32.totalorder %s33, 1
      %p252 = por %p250, %p251
      %p254 = scmp.ne.s32.totalorder %s237, %s253
      %p255 = scmp.eq.s32.totalorder %s33, 0
      %p256 = por %p254, %p255
      %s257 = ssub.s32 %s34, %s46
      %s258 = ssub.s32 %s35, %s42
      %s259 = sor.u32 %s257, %s258
      %p260 = scmp.eq.s32.totalorder %s259, 0
      %s262 = sadd.s32 %s261, 1
      %s263 = scalar_select %p260, %s261, %s262
      %p266 = pneg %p260
      %p267 = scmp.eq.s32.totalorder %s27, 1
      %p268 = por %p266, %p267
      %p269 = scmp.ne.s32.totalorder %s261, %s264
      %p270 = scmp.eq.s32.totalorder %s27, 0
      %p271 = por %p269, %p270
      %p272 = scmp.ne.s32.totalorder %s261, %s264
      %p273 = scmp.eq.s32.totalorder %s32, 1
      %p274 = por %p272, %p273
      %p275 = scmp.ne.s32.totalorder %s264, %s265
      %p276 = scmp.eq.s32.totalorder %s32, 0
      %p277 = por %p275, %p276
      %p278 = scmp.ne.s32.totalorder %s264, %s265
      %p279 = scmp.eq.s32.totalorder %s33, 1
      %p280 = por %p278, %p279
      %p282 = scmp.ne.s32.totalorder %s265, %s281
      %p283 = scmp.eq.s32.totalorder %s33, 0
      %p284 = por %p282, %p283
      %p285 = scmp.le.s32.totalorder 1, %s27
      %p286 = scmp.lt.s32.totalorder %s27, 3
      %p287 = pnand %p285, %p286
      %p288 = pneg %p287
      // Predicated region
      $region9: #{tpu_custom_call.1} parent=5 // pred_check
        _
      $region10: #{tpu_custom_call.1} parent=5 // pred_check_branch
        %290 = sbr.rel (%p287) target = $region12
      $region11: #{tpu_custom_call.1} parent=5 // pred_region
        %s291 = ssub.s32 %s27, 1
        // Predicated region
        $region13: #{tpu_custom_call.1} parent=11 // pred_check
          %p292 = pneg %p88
        $region14: #{tpu_custom_call.1} parent=11 // pred_check_branch
          %294 = sbr.rel (%p292) target = $region16
        $region15: #{tpu_custom_call.1} parent=11 // pred_region
          %s296 = ssub.s32 512, 512
          %297 = vsyncadd [#allocation6], %s296
          %s298 = sshll.u32 [#allocation5], 4
          %s299 = int_to_ptr.vmem [resolvable:$true] %s298
          %304 = dma.hbm_to_vmem [thread:$0]  %s1, 512, %s299, [#allocation6], 128, 128, 8
        $region16: #{tpu_custom_call.1} parent=11 // pred_fallthru
          _
        // Predicated region
        $region17: #{tpu_custom_call.1} parent=11 // pred_check
          %p305 = pneg %p109
        $region18: #{tpu_custom_call.1} parent=11 // pred_check_branch
          %307 = sbr.rel (%p305) target = $region20
        $region19: #{tpu_custom_call.1} parent=11 // pred_region
          _
        $region20: #{tpu_custom_call.1} parent=11 // pred_fallthru
          _
        // Predicated region
        $region21: #{tpu_custom_call.1} parent=11 // pred_check
          %p308 = pneg %p130
        $region22: #{tpu_custom_call.1} parent=11 // pred_check_branch
          %310 = sbr.rel (%p308) target = $region24
        $region23: #{tpu_custom_call.1} parent=11 // pred_region
          %s312 = ssub.s32 512, 512
          %313 = vsyncadd [#allocation6], %s312
          %s314 = sshll.u32 [#allocation7], 4
          %s315 = int_to_ptr.vmem [resolvable:$true] %s314
          %320 = dma.hbm_to_vmem [thread:$0]  %s3, 512, %s315, [#allocation6], 128, 128, 8
        $region24: #{tpu_custom_call.1} parent=11 // pred_fallthru
          _
        // Predicated region
        $region25: #{tpu_custom_call.1} parent=11 // pred_check
          %p321 = pneg %p151
        $region26: #{tpu_custom_call.1} parent=11 // pred_check_branch
          %323 = sbr.rel (%p321) target = $region28
        $region27: #{tpu_custom_call.1} parent=11 // pred_region
          _
        $region28: #{tpu_custom_call.1} parent=11 // pred_fallthru
          _
        // Predicated region
        $region29: #{tpu_custom_call.1} parent=11 // pred_check
          %p324 = pneg %p172
        $region30: #{tpu_custom_call.1} parent=11 // pred_check_branch
          %326 = sbr.rel (%p324) target = $region32
        $region31: #{tpu_custom_call.1} parent=11 // pred_region
          %s328 = ssub.s32 512, 512
          %329 = vsyncadd [#allocation9], %s328
          %s330 = sshll.u32 [#allocation8], 4
          %s331 = int_to_ptr.vmem [resolvable:$true] %s330
          %336 = dma.hbm_to_vmem [thread:$0]  %s5, 512, %s331, [#allocation9], 128, 128, 8
        $region32: #{tpu_custom_call.1} parent=11 // pred_fallthru
          _
        // Predicated region
        $region33: #{tpu_custom_call.1} parent=11 // pred_check
          %p337 = pneg %p193
        $region34: #{tpu_custom_call.1} parent=11 // pred_check_branch
          %339 = sbr.rel (%p337) target = $region36
        $region35: #{tpu_custom_call.1} parent=11 // pred_region
          _
        $region36: #{tpu_custom_call.1} parent=11 // pred_fallthru
          _
      $region12: #{tpu_custom_call.1} parent=5 // pred_fallthru
        _
      %p340 = scmp.lt.s32.totalorder %s27, 2
      // Predicated region
      $region37: #{tpu_custom_call.1} parent=5 // pred_check
        %p341 = pneg %p340
      $region38: #{tpu_custom_call.1} parent=5 // pred_check_branch
        %343 = sbr.rel (%p341) target = $region40
      $region39: #{tpu_custom_call.1} parent=5 // pred_region
        // Predicated region
        $region41: #{tpu_custom_call.1} parent=39 // pred_check
          %p344 = pneg %p61
        $region42: #{tpu_custom_call.1} parent=39 // pred_check_branch
          %346 = sbr.rel (%p344) target = $region44
        $region43: #{tpu_custom_call.1} parent=39 // pred_region
          %s347 = sand.u32 %s51, 1
          %s348 = scalar_lea.sflag [#allocation3], %s347
          %s349 = sand.u32 %s51, 1
          %s350 = smul.addr %s349, 16
          %s351 = scalar_lea.vmem [#allocation2], %s350
          %s352 = smul.u32 2, %s35
          %s354 = ssub.s32 256, 256
          %355 = vsyncadd %s348, %s354
          %s356 = smul.addr %s34, 2
          %s357 = sadd.s32 %s352, %s356
          %s358 = smul.addr %s357, 128
          %s359 = scalar_lea.hbm %s0, %s358
          %s360 = sshll.u32 %s351, 4
          %s361 = int_to_ptr.vmem [resolvable:$true] %s360
          %366 = dma.hbm_to_vmem [thread:$0]  %s359, 256, %s361, %s348, 128, 128, 8
        $region44: #{tpu_custom_call.1} parent=39 // pred_fallthru
          _
      $region40: #{tpu_custom_call.1} parent=5 // pred_fallthru
        _
      %p367 = scmp.le.s32.totalorder 1, %s27
      %p368 = scmp.lt.s32.totalorder %s27, 3
      %p369 = pnand %p367, %p368
      %p370 = pneg %p369
      // Predicated region
      $region45: #{tpu_custom_call.1} parent=5 // pred_check
        _
      $region46: #{tpu_custom_call.1} parent=5 // pred_check_branch
        %372 = sbr.rel (%p369) target = $region48
      $region47: #{tpu_custom_call.1} parent=5 // pred_region
        %s373 = ssub.s32 %s27, 1
        %s374 = sand.u32 %s54, 1
        %s375 = scalar_lea.sflag [#allocation3], %s374
        %s376 = sand.u32 %s54, 1
        %s377 = smul.addr %s376, 16
        %s378 = scalar_lea.vmem [#allocation2], %s377
        // Predicated region
        $region49: #{tpu_custom_call.1} parent=47 // pred_check
          %p379 = pneg %p67
        $region50: #{tpu_custom_call.1} parent=47 // pred_check_branch
          %381 = sbr.rel (%p379) target = $region52
        $region51: #{tpu_custom_call.1} parent=47 // pred_region
          %382 = dma.done %s375, 256
        $region52: #{tpu_custom_call.1} parent=47 // pred_fallthru
          _
        // Predicated region
        $region53: #{tpu_custom_call.1} parent=47 // pred_check
          %p383 = pneg %p88
        $region54: #{tpu_custom_call.1} parent=47 // pred_check_branch
          %385 = sbr.rel (%p383) target = $region56
        $region55: #{tpu_custom_call.1} parent=47 // pred_region
          %386 = dma.done [#allocation6], 512
        $region56: #{tpu_custom_call.1} parent=47 // pred_fallthru
          _
        // Predicated region
        $region57: #{tpu_custom_call.1} parent=47 // pred_check
          %p387 = pneg %p130
        $region58: #{tpu_custom_call.1} parent=47 // pred_check_branch
          %389 = sbr.rel (%p387) target = $region60
        $region59: #{tpu_custom_call.1} parent=47 // pred_region
          %390 = dma.done [#allocation6], 512
        $region60: #{tpu_custom_call.1} parent=47 // pred_fallthru
          _
        // Predicated region
        $region61: #{tpu_custom_call.1} parent=47 // pred_check
          %p391 = pneg %p172
        $region62: #{tpu_custom_call.1} parent=47 // pred_check_branch
          %393 = sbr.rel (%p391) target = $region64
        $region63: #{tpu_custom_call.1} parent=47 // pred_region
          %394 = dma.done [#allocation9], 512
        $region64: #{tpu_custom_call.1} parent=47 // pred_fallthru
          _
        %s395 = sand.u32 %s54, 1
        %s396 = scalar_lea.sflag [#allocation3], %s395
        %s397 = sand.u32 %s54, 1
        %s398 = smul.addr %s397, 16
        %s399 = scalar_lea.vmem [#allocation2], %s398
        %p400 = pneg %p67
        %p401 = pneg %p64
        %p402 = pneg %p88
        %p403 = pneg %p85
        %p404 = pneg %p109
        %p405 = pneg %p106
        %p406 = pneg %p130
        %p407 = pneg %p127
        %p408 = pneg %p151
        %p409 = pneg %p148
        %p410 = pneg %p172
        %p411 = pneg %p169
        %p412 = pneg %p193
        %p413 = pneg %p190
        %p414 = pneg %p221
        %p415 = pneg %p218
        %s416 = sand.u32 %s208, 1
        %s417 = scalar_lea.sflag [#allocation4], %s416
        %s418 = sand.u32 %s208, 1
        %s419 = smul.addr %s418, 16
        %s420 = scalar_lea.vmem [#allocation10], %s419
        %p421 = pneg %p249
        %p422 = pneg %p246
        %s423 = sand.u32 %s32, 1
        %s424 = scalar_lea.sflag [#allocation12], %s423
        %s425 = sand.u32 %s236, 1
        %s426 = smul.addr %s425, 16
        %s427 = scalar_lea.vmem [#allocation11], %s426
        %p428 = pneg %p277
        %p429 = pneg %p274
        %s430 = sand.u32 %s32, 1
        %s431 = scalar_lea.sflag [#allocation12], %s430
        %s432 = sand.u32 %s264, 1
        %s433 = smul.addr %s432, 16
        %s434 = scalar_lea.vmem [#allocation13], %s433
        %s435 = smul.u32 2, %s37
        %s436 = smul.u32 2, %s37
        %s437 = smul.u32 2, %s37
        %s438 = smul.u32 2, %s37
        %v439 = vld [vmem:[%s378] sm:$0xff]
        %v440 = vld [vmem:[%s378 + $0x8] sm:$0xff]
        %v441 = vld [vmem:[#allocation5] sm:$0xff]
        %v442 = vld [vmem:[#allocation5 + $0x8] sm:$0xff]
        %v443 = vld [vmem:[#allocation5 + $0x10] sm:$0xff]
        %v444 = vld [vmem:[#allocation5 + $0x18] sm:$0xff]
        %v445 = vld [vmem:[%s2] sm:$0x1]
        %v447 = vlaneseq
        %v448 = vshrl.u32 %v447, 7
        %v449 = vsub.s32 0, %v448
        %v450 = vrot.slane %v445, %v449
        %vm452 = vcmask 261120
        %v454 = vsel %vm452, %v439, 0
        %v457 = vsel %vm452, %v440, 0
        %459 = vmatprep.subr.mxu0 0.0
        %460 = vmatpush1.msra.mxu0 %v441
        %461 = vmatprep.subr.mxu0 0.0
        %462 = vmatpush1.msra.mxu0 %v442
        %463 = vmatprep.subr.mxu0 0.0
        %464 = vmatpush1.msra.mxu0 %v443
        %465 = vmatprep.subr.mxu0 0.0
        %466 = vmatpush1.msra.mxu0 %v444
        %467 = vmatprep.subr.mxu0 0.0
        %468 = vmatpush1.msra.mxu0 0.0
        %469 = vmatprep.subr.mxu0 0.0
        %470 = vmatpush1.msra.mxu0 0.0
        %471 = vmatprep.subr.mxu0 0.0
        %472 = vmatpush1.msra.mxu0 0.0
        %473 = vmatprep.subr.mxu0 0.0
        %474 = vmatpush1.msra.mxu0 0.0
        %475 = vmatprep.subr.mxu0 0.0
        %476 = vmatpush1.msra.mxu0 0.0
        %477 = vmatprep.subr.mxu0 0.0
        %478 = vmatpush1.msra.mxu0 0.0
        %479 = vmatprep.subr.mxu0 0.0
        %480 = vmatpush1.msra.mxu0 0.0
        %481 = vmatprep.subr.mxu0 0.0
        %482 = vmatpush1.msra.mxu0 0.0
        %483 = vmatprep.subr.mxu0 0.0
        %484 = vmatpush1.msra.mxu0 0.0
        %485 = vmatprep.subr.mxu0 0.0
        %486 = vmatpush1.msra.mxu0 0.0
        %487 = vmatprep.subr.mxu0 0.0
        %488 = vmatpush1.msra.mxu0 0.0
        %489 = vmatprep.subr.mxu0 0.0
        %490 = vmatpush1.msra.mxu0 0.0
        %491 = vmatprep.subr.mxu0 0.0
        %492 = vmatpush1.msra.mxu0 0.0
        %493 = vmatprep.subr.mxu0 0.0
        %494 = vmatpush1.msra.mxu0 0.0
        %495 = vmatprep.subr.mxu0 0.0
        %496 = vmatpush1.msra.mxu0 0.0
        %497 = vmatprep.subr.mxu0 0.0
        %498 = vmatpush1.msra.mxu0 0.0
        %499 = vmatprep.subr.mxu0 0.0
        %500 = vmatpush1.msra.mxu0 0.0
        %501 = vmatprep.subr.mxu0 0.0
        %502 = vmatpush1.msra.mxu0 0.0
        %503 = vmatprep.subr.mxu0 0.0
        %504 = vmatpush1.msra.mxu0 0.0
        %505 = vmatprep.subr.mxu0 0.0
        %506 = vmatpush1.msra.mxu0 0.0
        %507 = vmatprep.subr.mxu0 0.0
        %508 = vmatpush1.msra.mxu0 0.0
        %509 = vmatprep.subr.mxu0 0.0
        %510 = vmatpush1.msra.mxu0 0.0
        %511 = vmatprep.subr.mxu0 0.0
        %512 = vmatpush1.msra.mxu0 0.0
        %513 = vmatprep.subr.mxu0 0.0
        %514 = vmatpush1.msra.mxu0 0.0
        %515 = vmatprep.subr.mxu0 0.0
        %516 = vmatpush1.msra.mxu0 0.0
        %517 = vmatprep.subr.mxu0 0.0
        %518 = vmatpush1.msra.mxu0 0.0
        %519 = vmatprep.subr.mxu0 0.0
        %520 = vmatpush1.msra.mxu0 0.0
        %521 = vmatprep.subr.mxu0 0.0
        %522 = vmatpush1.msra.mxu0 0.0
        %523 = vmatprep.mubr.f32.mxu0 0.0
        %524 = vmatmul.mubr.f32.gmra.mrb[0].mxu0 %v454
        %v525 = vpop.f32.mrb[0].mxu0
        %v526 = vadd.f32 %v450, %v525
        %v527 = vpop.f32.mrb[0].mxu0
        %528 = vmatprep.mubr.f32.mxu0 0.0
        %529 = vmatmul.mubr.f32.gmra.mrb[0].mxu0 %v457
        %v530 = vpop.f32.mrb[0].mxu0
        %v531 = vadd.f32 %v450, %v530
        %v532 = vpop.f32.mrb[0].mxu0
        %533 = vdwg.mxu0
        %v534 = vmul.f32 %v526, 0.17677669
        %v535 = vmul.f32 %v531, 0.17677669
        %536 = vst.msk [vmem:[%s420] sm:$0xff] %vm452, %v534
        %537 = vst.msk [vmem:[%s420 + $0x8] sm:$0xff] %vm452, %v535
        %v538 = vld [vmem:[#allocation7] sm:$0xff]
        %v539 = vld [vmem:[#allocation7 + $0x8] sm:$0xff]
        %v540 = vld [vmem:[#allocation7 + $0x10] sm:$0xff]
        %v541 = vld [vmem:[#allocation7 + $0x18] sm:$0xff]
        %v542 = vld [vmem:[%s4] sm:$0x1]
        %v544 = vlaneseq
        %v545 = vshrl.u32 %v544, 7
        %v546 = vsub.s32 0, %v545
        %v547 = vrot.slane %v542, %v546
        %549 = vmatprep.subr.mxu0 0.0
        %550 = vmatpush1.msra.mxu0 %v538
        %551 = vmatprep.subr.mxu0 0.0
        %552 = vmatpush1.msra.mxu0 %v539
        %553 = vmatprep.subr.mxu0 0.0
        %554 = vmatpush1.msra.mxu0 %v540
        %555 = vmatprep.subr.mxu0 0.0
        %556 = vmatpush1.msra.mxu0 %v541
        %557 = vmatprep.subr.mxu0 0.0
        %558 = vmatpush1.msra.mxu0 0.0
        %559 = vmatprep.subr.mxu0 0.0
        %560 = vmatpush1.msra.mxu0 0.0
        %561 = vmatprep.subr.mxu0 0.0
        %562 = vmatpush1.msra.mxu0 0.0
        %563 = vmatprep.subr.mxu0 0.0
        %564 = vmatpush1.msra.mxu0 0.0
        %565 = vmatprep.subr.mxu0 0.0
        %566 = vmatpush1.msra.mxu0 0.0
        %567 = vmatprep.subr.mxu0 0.0
        %568 = vmatpush1.msra.mxu0 0.0
        %569 = vmatprep.subr.mxu0 0.0
        %570 = vmatpush1.msra.mxu0 0.0
        %571 = vmatprep.subr.mxu0 0.0
        %572 = vmatpush1.msra.mxu0 0.0
        %573 = vmatprep.subr.mxu0 0.0
        %574 = vmatpush1.msra.mxu0 0.0
        %575 = vmatprep.subr.mxu0 0.0
        %576 = vmatpush1.msra.mxu0 0.0
        %577 = vmatprep.subr.mxu0 0.0
        %578 = vmatpush1.msra.mxu0 0.0
        %579 = vmatprep.subr.mxu0 0.0
        %580 = vmatpush1.msra.mxu0 0.0
        %581 = vmatprep.subr.mxu0 0.0
        %582 = vmatpush1.msra.mxu0 0.0
        %583 = vmatprep.subr.mxu0 0.0
        %584 = vmatpush1.msra.mxu0 0.0
        %585 = vmatprep.subr.mxu0 0.0
        %586 = vmatpush1.msra.mxu0 0.0
        %587 = vmatprep.subr.mxu0 0.0
        %588 = vmatpush1.msra.mxu0 0.0
        %589 = vmatprep.subr.mxu0 0.0
        %590 = vmatpush1.msra.mxu0 0.0
        %591 = vmatprep.subr.mxu0 0.0
        %592 = vmatpush1.msra.mxu0 0.0
        %593 = vmatprep.subr.mxu0 0.0
        %594 = vmatpush1.msra.mxu0 0.0
        %595 = vmatprep.subr.mxu0 0.0
        %596 = vmatpush1.msra.mxu0 0.0
        %597 = vmatprep.subr.mxu0 0.0
        %598 = vmatpush1.msra.mxu0 0.0
        %599 = vmatprep.subr.mxu0 0.0
        %600 = vmatpush1.msra.mxu0 0.0
        %601 = vmatprep.subr.mxu0 0.0
        %602 = vmatpush1.msra.mxu0 0.0
        %603 = vmatprep.subr.mxu0 0.0
        %604 = vmatpush1.msra.mxu0 0.0
        %605 = vmatprep.subr.mxu0 0.0
        %606 = vmatpush1.msra.mxu0 0.0
        %607 = vmatprep.subr.mxu0 0.0
        %608 = vmatpush1.msra.mxu0 0.0
        %609 = vmatprep.subr.mxu0 0.0
        %610 = vmatpush1.msra.mxu0 0.0
        %611 = vmatprep.subr.mxu0 0.0
        %612 = vmatpush1.msra.mxu0 0.0
        %613 = vmatprep.mubr.f32.mxu0 0.0
        %614 = vmatmul.mubr.f32.gmra.mrb[0].mxu0 %v454
        %v615 = vpop.f32.mrb[0].mxu0
        %v616 = vadd.f32 %v547, %v615
        %v617 = vpop.f32.mrb[0].mxu0
        %618 = vmatprep.mubr.f32.mxu0 0.0
        %619 = vmatmul.mubr.f32.gmra.mrb[0].mxu0 %v457
        %v620 = vpop.f32.mrb[0].mxu0
        %v621 = vadd.f32 %v547, %v620
        %v622 = vpop.f32.mrb[0].mxu0
        %623 = vdwg.mxu0
        %624 = vst.msk [vmem:[%s427] sm:$0xff] %vm452, %v616
        %625 = vst.msk [vmem:[%s427 + $0x8] sm:$0xff] %vm452, %v621
        %v626 = vld [vmem:[#allocation8] sm:$0xff]
        %v627 = vld [vmem:[#allocation8 + $0x8] sm:$0xff]
        %v628 = vld [vmem:[#allocation8 + $0x10] sm:$0xff]
        %v629 = vld [vmem:[#allocation8 + $0x18] sm:$0xff]
        %v630 = vld [vmem:[%s6] sm:$0x1]
        %v632 = vlaneseq
        %v633 = vshrl.u32 %v632, 7
        %v634 = vsub.s32 0, %v633
        %v635 = vrot.slane %v630, %v634
        %637 = vmatprep.subr.mxu0 0.0
        %638 = vmatpush1.msra.mxu0 %v626
        %639 = vmatprep.subr.mxu0 0.0
        %640 = vmatpush1.msra.mxu0 %v627
        %641 = vmatprep.subr.mxu0 0.0
        %642 = vmatpush1.msra.mxu0 %v628
        %643 = vmatprep.subr.mxu0 0.0
        %644 = vmatpush1.msra.mxu0 %v629
        %645 = vmatprep.subr.mxu0 0.0
        %646 = vmatpush1.msra.mxu0 0.0
        %647 = vmatprep.subr.mxu0 0.0
        %648 = vmatpush1.msra.mxu0 0.0
        %649 = vmatprep.subr.mxu0 0.0
        %650 = vmatpush1.msra.mxu0 0.0
        %651 = vmatprep.subr.mxu0 0.0
        %652 = vmatpush1.msra.mxu0 0.0
        %653 = vmatprep.subr.mxu0 0.0
        %654 = vmatpush1.msra.mxu0 0.0
        %655 = vmatprep.subr.mxu0 0.0
        %656 = vmatpush1.msra.mxu0 0.0
        %657 = vmatprep.subr.mxu0 0.0
        %658 = vmatpush1.msra.mxu0 0.0
        %659 = vmatprep.subr.mxu0 0.0
        %660 = vmatpush1.msra.mxu0 0.0
        %661 = vmatprep.subr.mxu0 0.0
        %662 = vmatpush1.msra.mxu0 0.0
        %663 = vmatprep.subr.mxu0 0.0
        %664 = vmatpush1.msra.mxu0 0.0
        %665 = vmatprep.subr.mxu0 0.0
        %666 = vmatpush1.msra.mxu0 0.0
        %667 = vmatprep.subr.mxu0 0.0
        %668 = vmatpush1.msra.mxu0 0.0
        %669 = vmatprep.subr.mxu0 0.0
        %670 = vmatpush1.msra.mxu0 0.0
        %671 = vmatprep.subr.mxu0 0.0
        %672 = vmatpush1.msra.mxu0 0.0
        %673 = vmatprep.subr.mxu0 0.0
        %674 = vmatpush1.msra.mxu0 0.0
        %675 = vmatprep.subr.mxu0 0.0
        %676 = vmatpush1.msra.mxu0 0.0
        %677 = vmatprep.subr.mxu0 0.0
        %678 = vmatpush1.msra.mxu0 0.0
        %679 = vmatprep.subr.mxu0 0.0
        %680 = vmatpush1.msra.mxu0 0.0
        %681 = vmatprep.subr.mxu0 0.0
        %682 = vmatpush1.msra.mxu0 0.0
        %683 = vmatprep.subr.mxu0 0.0
        %684 = vmatpush1.msra.mxu0 0.0
        %685 = vmatprep.subr.mxu0 0.0
        %686 = vmatpush1.msra.mxu0 0.0
        %687 = vmatprep.subr.mxu0 0.0
        %688 = vmatpush1.msra.mxu0 0.0
        %689 = vmatprep.subr.mxu0 0.0
        %690 = vmatpush1.msra.mxu0 0.0
        %691 = vmatprep.subr.mxu0 0.0
        %692 = vmatpush1.msra.mxu0 0.0
        %693 = vmatprep.subr.mxu0 0.0
        %694 = vmatpush1.msra.mxu0 0.0
        %695 = vmatprep.subr.mxu0 0.0
        %696 = vmatpush1.msra.mxu0 0.0
        %697 = vmatprep.subr.mxu0 0.0
        %698 = vmatpush1.msra.mxu0 0.0
        %699 = vmatprep.subr.mxu0 0.0
        %700 = vmatpush1.msra.mxu0 0.0
        %701 = vmatprep.mubr.f32.mxu0 0.0
        %702 = vmatmul.mubr.f32.gmra.mrb[0].mxu0 %v454
        %v703 = vpop.f32.mrb[0].mxu0
        %v704 = vadd.f32 %v635, %v703
        %v705 = vpop.f32.mrb[0].mxu0
        %706 = vmatprep.mubr.f32.mxu0 0.0
        %707 = vmatmul.mubr.f32.gmra.mrb[0].mxu0 %v457
        %v708 = vpop.f32.mrb[0].mxu0
        %v709 = vadd.f32 %v635, %v708
        %v710 = vpop.f32.mrb[0].mxu0
        %711 = vdwg.mxu0
        %712 = vst.msk [vmem:[%s434] sm:$0xff] %vm452, %v704
        %713 = vst.msk [vmem:[%s434 + $0x8] sm:$0xff] %vm452, %v709
        %s714 = sand.u32 %s208, 1
        %s715 = scalar_lea.sflag [#allocation4], %s714
        %s716 = sand.u32 %s208, 1
        %s717 = smul.addr %s716, 16
        %s718 = scalar_lea.vmem [#allocation10], %s717
        %s719 = sand.u32 %s32, 1
        %s720 = scalar_lea.sflag [#allocation12], %s719
        %s721 = sand.u32 %s236, 1
        %s722 = smul.addr %s721, 16
        %s723 = scalar_lea.vmem [#allocation11], %s722
        %s724 = sand.u32 %s32, 1
        %s725 = scalar_lea.sflag [#allocation12], %s724
        %s726 = sand.u32 %s264, 1
        %s727 = smul.addr %s726, 16
        %s728 = scalar_lea.vmem [#allocation13], %s727
        // Predicated region
        $region65: #{tpu_custom_call.1} parent=47 // pred_check
          %p729 = pneg %p218
        $region66: #{tpu_custom_call.1} parent=47 // pred_check_branch
          %731 = sbr.rel (%p729) target = $region68
        $region67: #{tpu_custom_call.1} parent=47 // pred_region
          %s732 = smul.u32 2, %s37
          %s734 = ssub.s32 256, 256
          %735 = vsyncadd %s715, %s734
          %s736 = smul.addr %s36, 2
          %s737 = sadd.s32 %s732, %s736
          %s738 = smul.addr %s737, 128
          %s739 = scalar_lea.hbm %s7, %s738
          %s740 = sshll.u32 %s718, 4
          %s741 = int_to_ptr.vmem [resolvable:$true] %s740
          %746 = dma.vmem_to_hbm [thread:$0]  %s741, 256, %s739, %s715, 128, 128, 8
        $region68: #{tpu_custom_call.1} parent=47 // pred_fallthru
          _
        // Predicated region
        $region69: #{tpu_custom_call.1} parent=47 // pred_check
          %p747 = pneg %p246
        $region70: #{tpu_custom_call.1} parent=47 // pred_check_branch
          %749 = sbr.rel (%p747) target = $region72
        $region71: #{tpu_custom_call.1} parent=47 // pred_region
          %s750 = smul.u32 2, %s37
          %s752 = ssub.s32 256, 256
          %753 = vsyncadd %s720, %s752
          %s754 = smul.addr %s36, 2
          %s755 = sadd.s32 %s750, %s754
          %s756 = smul.addr %s755, 128
          %s757 = scalar_lea.hbm %s8, %s756
          %s758 = sshll.u32 %s723, 4
          %s759 = int_to_ptr.vmem [resolvable:$true] %s758
          %764 = dma.vmem_to_hbm [thread:$0]  %s759, 256, %s757, %s720, 128, 128, 8
        $region72: #{tpu_custom_call.1} parent=47 // pred_fallthru
          _
        // Predicated region
        $region73: #{tpu_custom_call.1} parent=47 // pred_check
          %p765 = pneg %p274
        $region74: #{tpu_custom_call.1} parent=47 // pred_check_branch
          %767 = sbr.rel (%p765) target = $region76
        $region75: #{tpu_custom_call.1} parent=47 // pred_region
          %s768 = smul.u32 2, %s37
          %s770 = ssub.s32 256, 256
          %771 = vsyncadd %s725, %s770
          %s772 = smul.addr %s36, 2
          %s773 = sadd.s32 %s768, %s772
          %s774 = smul.addr %s773, 128
          %s775 = scalar_lea.hbm %s9, %s774
          %s776 = sshll.u32 %s728, 4
          %s777 = int_to_ptr.vmem [resolvable:$true] %s776
          %782 = dma.vmem_to_hbm [thread:$0]  %s777, 256, %s775, %s725, 128, 128, 8
        $region76: #{tpu_custom_call.1} parent=47 // pred_fallthru
          _
      $region48: #{tpu_custom_call.1} parent=5 // pred_fallthru
        _
      %p783 = scmp.le.s32.totalorder 2, %s27
      // Predicated region
      $region77: #{tpu_custom_call.1} parent=5 // pred_check
        %p784 = pneg %p783
      $region78: #{tpu_custom_call.1} parent=5 // pred_check_branch
        %786 = sbr.rel (%p784) target = $region80
      $region79: #{tpu_custom_call.1} parent=5 // pred_region
        %s787 = ssub.s32 %s27, 2
        // Predicated region
        $region81: #{tpu_custom_call.1} parent=79 // pred_check
          %p788 = pneg %p224
        $region82: #{tpu_custom_call.1} parent=79 // pred_check_branch
          %790 = sbr.rel (%p788) target = $region84
        $region83: #{tpu_custom_call.1} parent=79 // pred_region
          %s791 = sand.u32 %s209, 1
          %s792 = scalar_lea.sflag [#allocation4], %s791
          %s793 = sand.u32 %s209, 1
          %s794 = smul.addr %s793, 16
          %s795 = scalar_lea.vmem [#allocation10], %s794
          %796 = dma.done %s792, 256
        $region84: #{tpu_custom_call.1} parent=79 // pred_fallthru
          _
        // Predicated region
        $region85: #{tpu_custom_call.1} parent=79 // pred_check
          %p797 = pneg %p252
        $region86: #{tpu_custom_call.1} parent=79 // pred_check_branch
          %799 = sbr.rel (%p797) target = $region88
        $region87: #{tpu_custom_call.1} parent=79 // pred_region
          %s800 = sand.u32 %s33, 1
          %s801 = scalar_lea.sflag [#allocation12], %s800
          %s802 = sand.u32 %s237, 1
          %s803 = smul.addr %s802, 16
          %s804 = scalar_lea.vmem [#allocation11], %s803
          %805 = dma.done %s801, 256
        $region88: #{tpu_custom_call.1} parent=79 // pred_fallthru
          _
        // Predicated region
        $region89: #{tpu_custom_call.1} parent=79 // pred_check
          %p806 = pneg %p280
        $region90: #{tpu_custom_call.1} parent=79 // pred_check_branch
          %808 = sbr.rel (%p806) target = $region92
        $region91: #{tpu_custom_call.1} parent=79 // pred_region
          %s809 = sand.u32 %s33, 1
          %s810 = scalar_lea.sflag [#allocation12], %s809
          %s811 = sand.u32 %s265, 1
          %s812 = smul.addr %s811, 16
          %s813 = scalar_lea.vmem [#allocation13], %s812
          %814 = dma.done %s810, 256
        $region92: #{tpu_custom_call.1} parent=79 // pred_fallthru
          _
      $region80: #{tpu_custom_call.1} parent=5 // pred_fallthru
        _
    $region6: #{tpu_custom_call.1} parent=1 // loop_footer
      %s31 = sadd.s32 1, %s27
    $region7: #{tpu_custom_call.1} parent=1 // loop_footer_branch
      %26 = sbr.rel target = $region3
    $region8: #{tpu_custom_call.1} parent=1 // loop_exit
      _
    %815 = vsyncpa [#allocation3], 1
    %s816 = scalar_lea.sflag [#allocation3], 1
    %817 = vsyncpa %s816, 1
    %818 = vsyncpa [#allocation6], 1
    %819 = vsyncpa [#allocation9], 1
    %820 = vsyncpa [#allocation4], 1
    %s821 = scalar_lea.sflag [#allocation4], 1
    %822 = vsyncpa %s821, 1
    %823 = vsyncpa [#allocation12], 1
    %s824 = scalar_lea.sflag [#allocation12], 1
    %825 = vsyncpa %s824, 1

</llo_original>
